<compile_context>
chip_gen: v7x
topology: tpu7x:2x2x1
jax: 0.10.0
libtpu: 0.0.40
codegen_flags: <defaults>
</compile_context>

<pallas_src>
import functools

import jax
import jax.numpy as jnp
from jax.experimental import pallas as pl
from jax.experimental.pallas import tpu as pltpu

EMBED_DIM = 32
NUM_COMPONENTS = 4


def _round_up(x, m):
    return ((x + m - 1) // m) * m


def mixture_kernel(u_ref, it_ref, wproj_ref, sel_ref, bias_ref, out_ref,
                   *, approx_recip):
    """One batch tile; batch laid out along lanes (last dim).

    u_ref, it_ref : (E, T)        user / item embeddings  (compute dtype)
    wproj_ref     : (2*C*E, E)    [taste ; attention] weights, (out, in) layout
    sel_ref       : (2*C, 2*C*E)  block-indicator selector (compute dtype; 0/1)
    bias_ref      : (1, T)        fused user_bias + item_bias (f32)
    out_ref       : (1, T)        predictions (f32)
    """
    e_dim = it_ref.shape[0]
    two_c = wproj_ref.shape[0] // e_dim
    n_comp = two_c // 2

    u = u_ref[...]                                     # (E, T)
    it = it_ref[...]                                   # (E, T)

    # Fused taste+attention projection: one MXU matmul, batch in lanes.
    # Accumulate f32, then keep the big slab in the compute dtype so the
    # elementwise stage and the selector matmul move half the vreg traffic.
    proj = jnp.dot(wproj_ref[...], u,
                   preferred_element_type=jnp.float32)           # (2CE, T) f32
    proj = proj.astype(it.dtype)                                 # (2CE, T)

    # Per-component dot products with the item embedding:
    # broadcast multiply on a (2C, E, T) view (no tiled item copy), then one
    # selector matmul that sums each E-row block.
    #   dots rows 0..C-1  = taste·item   (prefs)
    #   dots rows C..2C-1 = attn ·item   (scores)
    t_lanes = proj.shape[-1]
    prod = (proj.reshape(two_c, e_dim, t_lanes)
            * it[None, :, :]).reshape(two_c * e_dim, t_lanes)    # (2CE, T)
    dots = jnp.dot(sel_ref[...], prod,
                   preferred_element_type=jnp.float32)           # (2C, T) f32

    # Softmax over components + weighted preference, unrolled (C static & tiny).
    prefs = [dots[c:c + 1, :] for c in range(n_comp)]            # each (1, T)
    scores = [dots[n_comp + c:n_comp + c + 1, :] for c in range(n_comp)]

    m = scores[0]
    for s in scores[1:]:
        m = jnp.maximum(m, s)
    exps = [jnp.exp(s - m) for s in scores]
    den = exps[0]
    num = exps[0] * prefs[0]
    for c in range(1, n_comp):
        den = den + exps[c]
        num = num + exps[c] * prefs[c]
    weighted = num * pl.reciprocal(den, approx=approx_recip)     # (1, T) f32

    out_ref[...] = (weighted + bias_ref[...]).astype(out_ref.dtype)


def mixture_net_forward(user_ids, item_ids, params, *, tile_b=2048,
                        compute_dtype=jnp.bfloat16):
    """Plain-JAX glue (gathers, layout) + pallas_call on the hot path."""
    E = params["user_embeddings"].shape[1]
    C = params["taste_projection"].shape[0] // E
    B = user_ids.shape[0]

    # Cast tables before the gather so the gather/pad/transpose pass moves
    # compute-dtype (bf16) bytes instead of f32.
    u_tab = params["user_embeddings"].astype(compute_dtype)
    i_tab = params["item_embeddings"].astype(compute_dtype)
    u_emb = jnp.take(u_tab, user_ids, axis=0)                          # (B, E)
    i_emb = jnp.take(i_tab, item_ids, axis=0)                          # (B, E)
    u_bias = jnp.take(params["user_biases"], user_ids, axis=0)[:, 0]   # (B,)
    i_bias = jnp.take(params["item_biases"], item_ids, axis=0)[:, 0]   # (B,)
    bias = (u_bias + i_bias).astype(jnp.float32)                       # fused

    # Batch tiling (lane-dense, batch-last).  Clamp the tile to the padded
    # batch, then split so num_tiles >= 2 when possible (megacore on v7x).
    tile_b = _round_up(max(128, min(tile_b, _round_up(B, 128))), 128)
    b_pad = _round_up(B, tile_b)
    if b_pad // tile_b < 2 and b_pad >= 256:
        tile_b = _round_up(b_pad // 2, 128)
        b_pad = _round_up(B, tile_b)
    pad = b_pad - B
    num_tiles = b_pad // tile_b

    u_t = jnp.pad(u_emb, ((0, pad), (0, 0))).T                         # (E, Bp)
    i_t = jnp.pad(i_emb, ((0, pad), (0, 0))).T                         # (E, Bp)
    bias_p = jnp.pad(bias, (0, pad))[None, :]                          # (1, Bp)

    # Fused [taste ; attention] projection weight, kept in (out, in) = (2CE, E)
    # orientation so the kernel computes W @ u_t (== (u @ W.T).T).
    w_fused = jnp.concatenate(
        [params["taste_projection"], params["attention_projection"]],
        axis=0).astype(compute_dtype)                                  # (2CE, E)

    # Static block-indicator selector: sel[k, j] = 1 iff j // E == k.
    # 0/1 is exact in bf16; selector matmul accumulates in f32.
    sel = (jnp.arange(2 * C)[:, None]
           == (jnp.arange(2 * C * E)[None, :] // E)).astype(compute_dtype)

    # VMEM budget: double-buffered streaming tiles + resident weights + the
    # in-kernel slabs, with 2x headroom.  Floor at the 32 MiB scoped default,
    # cap at 48 MiB (safe on v5e/v6e 128 MiB and v7x 64 MiB-per-TC physical).
    itemsize = jnp.dtype(compute_dtype).itemsize
    per_step = (
        2 * 2 * E * tile_b * itemsize                      # u/it tiles (x2 buf)
        + 2 * 2 * tile_b * 4                               # bias in + out
        + 2 * (2 * C * E * E + 2 * C * 2 * C * E) * itemsize  # weights + sel
        + 2 * C * E * tile_b * (4 + 2 * itemsize)          # f32 proj + slab + prod
        + 8 * 2 * C * tile_b * 4                           # dots + softmax tmp
    )
    vmem_limit = int(min(max(2 * per_step, 32 << 20), 48 << 20))

    kernel = functools.partial(
        mixture_kernel,
        approx_recip=(jnp.dtype(compute_dtype) != jnp.dtype(jnp.float32)))

    out = pl.pallas_call(
        kernel,
        out_shape=jax.ShapeDtypeStruct((1, b_pad), jnp.float32),
        grid=(num_tiles,),
        in_specs=[
            pl.BlockSpec((E, tile_b), lambda i: (0, i)),          # u_t
            pl.BlockSpec((E, tile_b), lambda i: (0, i)),          # i_t
            pl.BlockSpec((2 * C * E, E), lambda i: (0, 0)),       # fused weights
            pl.BlockSpec((2 * C, 2 * C * E), lambda i: (0, 0)),   # selector
            pl.BlockSpec((1, tile_b), lambda i: (0, i)),          # fused bias
        ],
        out_specs=pl.BlockSpec((1, tile_b), lambda i: (0, i)),
        compiler_params=pltpu.CompilerParams(
            dimension_semantics=("parallel",),
            vmem_limit_bytes=vmem_limit),
    )(u_t, i_t, w_fused, sel, bias_p)

    return out[0, :B]                                                  # (B,)


def init_params(key, num_users, num_items, embedding_dim=EMBED_DIM,
                num_components=NUM_COMPONENTS, projection_scale=1.0):
    ks = jax.random.split(key, 6)
    # ScaledEmbedding: N(0, 1/embedding_dim)
    u_e = jax.random.normal(ks[0], (num_users, embedding_dim),
                            jnp.float32) / embedding_dim
    i_e = jax.random.normal(ks[1], (num_items, embedding_dim),
                            jnp.float32) / embedding_dim
    # ZeroEmbedding initializes to zero; use small random values here so the
    # bias path is actually exercised by the correctness check.
    u_b = 0.05 * jax.random.normal(ks[2], (num_users, 1), jnp.float32)
    i_b = 0.05 * jax.random.normal(ks[3], (num_items, 1), jnp.float32)
    # nn.Linear(E, C*E, bias=False) weights (out, in), xavier_normal(gain).
    fan_out, fan_in = embedding_dim * num_components, embedding_dim
    std = projection_scale * (2.0 / (fan_in + fan_out)) ** 0.5
    tp = std * jax.random.normal(ks[4], (fan_out, fan_in), jnp.float32)
    ap = std * jax.random.normal(ks[5], (fan_out, fan_in), jnp.float32)
    return {
        "user_embeddings": u_e, "item_embeddings": i_e,
        "user_biases": u_b, "item_biases": i_b,
        "taste_projection": tp, "attention_projection": ap,
    }


def reference_forward(user_ids, item_ids, params):
    """Pure-JAX f32 reference mirroring the PyTorch graph."""
    u = jnp.take(params["user_embeddings"], user_ids, axis=0)
    it = jnp.take(params["item_embeddings"], item_ids, axis=0)
    B, E = it.shape
    C = params["taste_projection"].shape[0] // E
    tastes = (u @ params["taste_projection"].T).reshape(B, C, E)
    attn_p = (u @ params["attention_projection"].T).reshape(B, C, E)
    scores = jnp.sum(attn_p * it[:, None, :], axis=2)                # (B, C)
    attention = jax.nn.softmax(scores, axis=1)                       # (B, C)
    weighted_pref = jnp.sum(tastes * attention[:, :, None], axis=1)  # (B, E)
    dot = jnp.sum(weighted_pref * it, axis=1)                        # (B,)
    ub = jnp.take(params["user_biases"], user_ids, axis=0)[:, 0]
    ib = jnp.take(params["item_biases"], item_ids, axis=0)[:, 0]
    return dot + ub + ib


if __name__ == "__main__":
    num_users, num_items = 50, 40
    batch = 520            # non-multiple of the tile to exercise padding

    key = jax.random.PRNGKey(0)
    k_params, k_uid, k_iid = jax.random.split(key, 3)

    params = init_params(k_params, num_users, num_items,
                         EMBED_DIM, NUM_COMPONENTS)
    user_ids = jax.random.randint(k_uid, (batch,), 0, num_users, jnp.int32)
    item_ids = jax.random.randint(k_iid, (batch,), 0, num_items, jnp.int32)

    fwd = jax.jit(mixture_net_forward,
                  static_argnames=("tile_b", "compute_dtype"))
    ref = reference_forward(user_ids, item_ids, params)

    # f32 path: tight check of the kernel math (multi-tile grid + padding,
    # exact reciprocal on this path).
    out_f32 = jax.block_until_ready(
        fwd(user_ids, item_ids, params, tile_b=256,
            compute_dtype=jnp.float32))
    assert out_f32.shape == (batch,)
    assert jnp.allclose(out_f32, ref, atol=5e-5, rtol=5e-3), (out_f32[:4], ref[:4])

    # bf16 path (production dtype for v5e/v6e/v7x): looser tolerance; also
    # exercises the default large-tile / auto-split path.
    out_bf16 = jax.block_until_ready(
        fwd(user_ids, item_ids, params, compute_dtype=jnp.bfloat16))
    assert out_bf16.shape == (batch,)
    assert jnp.allclose(out_bf16, ref, atol=1e-3, rtol=5e-2), (out_bf16[:4], ref[:4])

    print("KERNEL_OK")
</pallas_src>

<mosaic_0001>
module attributes {stable_mosaic.version = 11 : i64} {
  func.func @mixture_kernel(%arg0: i32, %arg1: memref<32x256xf32, #tpu.memory_space<vmem>>, %arg2: memref<32x256xf32, #tpu.memory_space<vmem>>, %arg3: memref<256x32xf32, #tpu.memory_space<vmem>>, %arg4: memref<8x256xf32, #tpu.memory_space<vmem>>, %arg5: memref<1x256xf32, #tpu.memory_space<vmem>>, %arg6: memref<1x256xf32, #tpu.memory_space<vmem>>) attributes {dimension_semantics = [#tpu.dimension_semantics<parallel>], iteration_bounds = array<i64: 3>, scalar_prefetch = 0 : i64, scratch_operands = 0 : i64, tpu.core_type = #tpu.core_type<tc>, window_params = [{transform_indices = @transform_0, window_bounds = array<i64: 32, 256>}, {transform_indices = @transform_1, window_bounds = array<i64: 32, 256>}, {pipeline_mode = #tpu.pipeline_mode<synchronous>, transform_indices = @transform_2, window_bounds = array<i64: 256, 32>}, {pipeline_mode = #tpu.pipeline_mode<synchronous>, transform_indices = @transform_3, window_bounds = array<i64: 8, 256>}, {transform_indices = @transform_4, window_bounds = array<i64: 1, 256>}, {transform_indices = @transform_5, window_bounds = array<i64: 1, 256>}]} {
    %c0 = arith.constant 0 : index
    %c0_0 = arith.constant 0 : index
    %0 = vector.load %arg1[%c0, %c0_0] : memref<32x256xf32, #tpu.memory_space<vmem>>, vector<32x256xf32>
    %c0_1 = arith.constant 0 : index
    %c0_2 = arith.constant 0 : index
    %1 = vector.load %arg2[%c0_1, %c0_2] : memref<32x256xf32, #tpu.memory_space<vmem>>, vector<32x256xf32>
    %c0_3 = arith.constant 0 : index
    %c0_4 = arith.constant 0 : index
    %2 = vector.load %arg3[%c0_3, %c0_4] : memref<256x32xf32, #tpu.memory_space<vmem>>, vector<256x32xf32>
    %cst = arith.constant dense<0.000000e+00> : vector<256x256xf32>
    %3 = tpu.matmul %2, %0, %cst {dimension_numbers = #tpu.dot_dimension_numbers<[1], [0], [0], [1], [0, 0, 1, 1], [], []>} : vector<256x32xf32>, vector<32x256xf32>, vector<256x256xf32> -> vector<256x256xf32>
    %4 = vector.shape_cast %3 : vector<256x256xf32> to vector<8x32x256xf32>
    %5 = vector.shape_cast %1 : vector<32x256xf32> to vector<1x32x256xf32>
    %6 = vector.broadcast %5 : vector<1x32x256xf32> to vector<8x32x256xf32>
    %7 = arith.mulf %4, %6 : vector<8x32x256xf32>
    %8 = vector.shape_cast %7 : vector<8x32x256xf32> to vector<256x256xf32>
    %c0_5 = arith.constant 0 : index
    %c0_6 = arith.constant 0 : index
    %9 = vector.load %arg4[%c0_5, %c0_6] : memref<8x256xf32, #tpu.memory_space<vmem>>, vector<8x256xf32>
    %cst_7 = arith.constant dense<0.000000e+00> : vector<8x256xf32>
    %10 = tpu.matmul %9, %8, %cst_7 {dimension_numbers = #tpu.dot_dimension_numbers<[1], [0], [0], [1], [0, 0, 1, 1], [], []>} : vector<8x256xf32>, vector<256x256xf32>, vector<8x256xf32> -> vector<8x256xf32>
    %11 = vector.extract_strided_slice %10 {offsets = [0, 0], sizes = [1, 256], strides = [1, 1]} : vector<8x256xf32> to vector<1x256xf32>
    %12 = vector.extract_strided_slice %10 {offsets = [1, 0], sizes = [1, 256], strides = [1, 1]} : vector<8x256xf32> to vector<1x256xf32>
    %13 = vector.extract_strided_slice %10 {offsets = [2, 0], sizes = [1, 256], strides = [1, 1]} : vector<8x256xf32> to vector<1x256xf32>
    %14 = vector.extract_strided_slice %10 {offsets = [3, 0], sizes = [1, 256], strides = [1, 1]} : vector<8x256xf32> to vector<1x256xf32>
    %15 = vector.extract_strided_slice %10 {offsets = [4, 0], sizes = [1, 256], strides = [1, 1]} : vector<8x256xf32> to vector<1x256xf32>
    %16 = vector.extract_strided_slice %10 {offsets = [5, 0], sizes = [1, 256], strides = [1, 1]} : vector<8x256xf32> to vector<1x256xf32>
    %17 = vector.extract_strided_slice %10 {offsets = [6, 0], sizes = [1, 256], strides = [1, 1]} : vector<8x256xf32> to vector<1x256xf32>
    %18 = vector.extract_strided_slice %10 {offsets = [7, 0], sizes = [1, 256], strides = [1, 1]} : vector<8x256xf32> to vector<1x256xf32>
    %19 = arith.maximumf %15, %16 : vector<1x256xf32>
    %20 = arith.maximumf %19, %17 : vector<1x256xf32>
    %21 = arith.maximumf %20, %18 : vector<1x256xf32>
    %22 = arith.subf %15, %21 : vector<1x256xf32>
    %23 = math.exp %22 : vector<1x256xf32>
    %24 = arith.subf %16, %21 : vector<1x256xf32>
    %25 = math.exp %24 : vector<1x256xf32>
    %26 = arith.subf %17, %21 : vector<1x256xf32>
    %27 = math.exp %26 : vector<1x256xf32>
    %28 = arith.subf %18, %21 : vector<1x256xf32>
    %29 = math.exp %28 : vector<1x256xf32>
    %30 = arith.mulf %23, %11 : vector<1x256xf32>
    %31 = arith.addf %23, %25 : vector<1x256xf32>
    %32 = arith.mulf %25, %12 : vector<1x256xf32>
    %33 = arith.addf %30, %32 : vector<1x256xf32>
    %34 = arith.addf %31, %27 : vector<1x256xf32>
    %35 = arith.mulf %27, %13 : vector<1x256xf32>
    %36 = arith.addf %33, %35 : vector<1x256xf32>
    %37 = arith.addf %34, %29 : vector<1x256xf32>
    %38 = arith.mulf %29, %14 : vector<1x256xf32>
    %39 = arith.addf %36, %38 : vector<1x256xf32>
    %40 = tpu.reciprocal %37 : vector<1x256xf32> -> vector<1x256xf32>
    %41 = arith.mulf %39, %40 : vector<1x256xf32>
    %c0_8 = arith.constant 0 : index
    %c0_9 = arith.constant 0 : index
    %42 = vector.load %arg5[%c0_8, %c0_9] : memref<1x256xf32, #tpu.memory_space<vmem>>, vector<1x256xf32>
    %43 = arith.addf %41, %42 : vector<1x256xf32>
    %c0_10 = arith.constant 0 : index
    %c0_11 = arith.constant 0 : index
    %44 = vector.load %arg6[%c0_10, %c0_11] : memref<1x256xf32, #tpu.memory_space<vmem>>, vector<1x256xf32>
    tpu.vector_store %arg6[%c0_10, %c0_11], %43 {strides = array<i32>} : memref<1x256xf32, #tpu.memory_space<vmem>>, vector<1x256xf32>,
    return
  }
  func.func @transform_0(%arg0: i32) -> (i32, i32) {
    %c0_i32 = arith.constant 0 : i32
    %c0_i32_0 = arith.constant 0 : i32
    return %c0_i32, %arg0 : i32, i32
  }
  func.func @transform_1(%arg0: i32) -> (i32, i32) {
    %c0_i32 = arith.constant 0 : i32
    %c0_i32_0 = arith.constant 0 : i32
    return %c0_i32, %arg0 : i32, i32
  }
  func.func @transform_2(%arg0: i32) -> (i32, i32) {
    %c0_i32 = arith.constant 0 : i32
    %c0_i32_0 = arith.constant 0 : i32
    %c0_i32_1 = arith.constant 0 : i32
    return %c0_i32, %c0_i32_0 : i32, i32
  }
  func.func @transform_3(%arg0: i32) -> (i32, i32) {
    %c0_i32 = arith.constant 0 : i32
    %c0_i32_0 = arith.constant 0 : i32
    %c0_i32_1 = arith.constant 0 : i32
    return %c0_i32, %c0_i32_0 : i32, i32
  }
  func.func @transform_4(%arg0: i32) -> (i32, i32) {
    %c0_i32 = arith.constant 0 : i32
    %c0_i32_0 = arith.constant 0 : i32
    return %c0_i32, %arg0 : i32, i32
  }
  func.func @transform_5(%arg0: i32) -> (i32, i32) {
    %c0_i32 = arith.constant 0 : i32
    %c0_i32_0 = arith.constant 0 : i32
    return %c0_i32, %arg0 : i32, i32
  }
}

</mosaic_0001>

<llo_original>
// kernel: mixture_net_forward.1
$region0: #{mixture_net_forward.1}
  #allocation0 [shape = 'u32[]', space=smem, size = 0x4, offset = 0x4, fixed_abs, tag = 'smem constant byte address 0x4 - core index']
  #allocation1 [shape = 'u32[144,128]{1,0:T(1,128)}', space=vmem, size = 0x12000, scoped, tag = 'internal scratch']
  %s0 = inlined_call_operand.vmem [shape: f32[32,768], index: 0, kind: input, shape index: {}]
  %s1 = inlined_call_operand.vmem [shape: f32[32,768], index: 1, kind: input, shape index: {}]
  %s2 = inlined_call_operand.vmem [shape: f32[256,32], index: 2, kind: input, shape index: {}]
  %s3 = inlined_call_operand.vmem [shape: f32[8,256], index: 3, kind: input, shape index: {}]
  %s4 = inlined_call_operand.vmem [shape: f32[1,768], index: 4, kind: input, shape index: {}]
  %s5 = inlined_call_operand.vmem [shape: f32[1,768], index: 5, kind: output, shape index: {}]
  %s6 = sld [smem:[#allocation0]]
  $region99: #{mixture_net_forward.1} parent=0
    _
  %s8 = ssub.s32 1, %s6
  %s9 = scalar_select 0, %s8, %s6
  $region1: #{mixture_net_forward.1} parent=0
    #allocation2 [shape = 'u8[65536]{0}', space=vmem, size = 0x10000, scoped, tag = 'input window, operand 0']
    #allocation3 [shape = 'u8[65536]{0}', space=vmem, size = 0x10000, scoped, tag = 'input window, operand 1']
    loop: start=0, step=1, limit=5
    $region2: #{mixture_net_forward.1} parent=1 // loop_pre_header
      _
    $region3: #{mixture_net_forward.1} parent=1 // loop_header
      %s11 = sphi 0, %s15
      %p12 = scmp.ge.s32.totalorder %s11, 5
      %s21 = sphi 0, %s23
      %s24 = sphi 0, %s21
      %s25 = sphi 0, %s24
      %s41 = sphi 0, %s25
      %s47 = sphi 0, %s49
      %s50 = sphi 0, %s47
      %s51 = sphi 0, %s50
      %s67 = sphi 0, %s51
      %s71 = sphi 0, %s71
      %s73 = sphi 0, %s71
      %s74 = sphi 0, %s73
      %s88 = sphi 0, %s74
      %s92 = sphi 0, %s92
      %s94 = sphi 0, %s92
      %s95 = sphi 0, %s94
      %s109 = sphi 0, %s95
      %s115 = sphi 0, %s117
      %s118 = sphi 0, %s115
      %s119 = sphi 0, %s118
      %s135 = sphi 0, %s119
      %s141 = sphi 0, %s143
      %s144 = sphi 0, %s141
      %s145 = sphi 0, %s144
      %s161 = sphi 0, %s145
    $region4: #{mixture_net_forward.1} parent=1 // loop_header_branch
      %14 = sbr.rel (%p12) target = $region8
    $region5: #{mixture_net_forward.1} parent=1 // loop_body
      %s16 = ssub.s32 %s11, 1
      %s17 = ssub.s32 %s11, 2
      %s18 = sadd.s32 %s11, 1
      %s19 = ssub.s32 %s11, %s18
      %p20 = scmp.eq.s32.totalorder %s19, 0
      %s22 = sadd.s32 %s21, 1
      %s23 = scalar_select %p20, %s21, %s22
      %p26 = pneg %p20
      %p27 = scmp.eq.s32.totalorder %s11, 2
      %p28 = por %p26, %p27
      %p29 = scmp.ne.s32.totalorder %s21, %s24
      %p30 = scmp.eq.s32.totalorder %s11, 0
      %p31 = por %p29, %p30
      %p32 = scmp.ne.s32.totalorder %s21, %s24
      %p33 = scmp.eq.s32.totalorder %s16, 2
      %p34 = por %p32, %p33
      %p35 = scmp.ne.s32.totalorder %s24, %s25
      %p36 = scmp.eq.s32.totalorder %s16, 0
      %p37 = por %p35, %p36
      %p38 = scmp.ne.s32.totalorder %s24, %s25
      %p39 = scmp.eq.s32.totalorder %s17, 2
      %p40 = por %p38, %p39
      %p42 = scmp.ne.s32.totalorder %s25, %s41
      %p43 = scmp.eq.s32.totalorder %s17, 0
      %p44 = por %p42, %p43
      %s45 = ssub.s32 %s11, %s18
      %p46 = scmp.eq.s32.totalorder %s45, 0
      %s48 = sadd.s32 %s47, 1
      %s49 = scalar_select %p46, %s47, %s48
      %p52 = pneg %p46
      %p53 = scmp.eq.s32.totalorder %s11, 2
      %p54 = por %p52, %p53
      %p55 = scmp.ne.s32.totalorder %s47, %s50
      %p56 = scmp.eq.s32.totalorder %s11, 0
      %p57 = por %p55, %p56
      %p58 = scmp.ne.s32.totalorder %s47, %s50
      %p59 = scmp.eq.s32.totalorder %s16, 2
      %p60 = por %p58, %p59
      %p61 = scmp.ne.s32.totalorder %s50, %s51
      %p62 = scmp.eq.s32.totalorder %s16, 0
      %p63 = por %p61, %p62
      %p64 = scmp.ne.s32.totalorder %s50, %s51
      %p65 = scmp.eq.s32.totalorder %s17, 2
      %p66 = por %p64, %p65
      %p68 = scmp.ne.s32.totalorder %s51, %s67
      %p69 = scmp.eq.s32.totalorder %s17, 0
      %p70 = por %p68, %p69
      %s72 = sadd.s32 %s71, 1
      %p75 = scmp.eq.s32.totalorder %s11, 2
      %p76 = scmp.ne.s32.totalorder %s71, %s73
      %p77 = scmp.eq.s32.totalorder %s11, 0
      %p78 = por %p76, %p77
      %p79 = scmp.ne.s32.totalorder %s71, %s73
      %p80 = scmp.eq.s32.totalorder %s16, 2
      %p81 = por %p79, %p80
      %p82 = scmp.ne.s32.totalorder %s73, %s74
      %p83 = scmp.eq.s32.totalorder %s16, 0
      %p84 = por %p82, %p83
      %p85 = scmp.ne.s32.totalorder %s73, %s74
      %p86 = scmp.eq.s32.totalorder %s17, 2
      %p87 = por %p85, %p86
      %p89 = scmp.ne.s32.totalorder %s74, %s88
      %p90 = scmp.eq.s32.totalorder %s17, 0
      %p91 = por %p89, %p90
      %s93 = sadd.s32 %s92, 1
      %p96 = scmp.eq.s32.totalorder %s11, 2
      %p97 = scmp.ne.s32.totalorder %s92, %s94
      %p98 = scmp.eq.s32.totalorder %s11, 0
      %p99 = por %p97, %p98
      %p100 = scmp.ne.s32.totalorder %s92, %s94
      %p101 = scmp.eq.s32.totalorder %s16, 2
      %p102 = por %p100, %p101
      %p103 = scmp.ne.s32.totalorder %s94, %s95
      %p104 = scmp.eq.s32.totalorder %s16, 0
      %p105 = por %p103, %p104
      %p106 = scmp.ne.s32.totalorder %s94, %s95
      %p107 = scmp.eq.s32.totalorder %s17, 2
      %p108 = por %p106, %p107
      %p110 = scmp.ne.s32.totalorder %s95, %s109
      %p111 = scmp.eq.s32.totalorder %s17, 0
      %p112 = por %p110, %p111
      %s113 = ssub.s32 %s11, %s18
      %p114 = scmp.eq.s32.totalorder %s113, 0
      %s116 = sadd.s32 %s115, 1
      %s117 = scalar_select %p114, %s115, %s116
      %p120 = pneg %p114
      %p121 = scmp.eq.s32.totalorder %s11, 2
      %p122 = por %p120, %p121
      %p123 = scmp.ne.s32.totalorder %s115, %s118
      %p124 = scmp.eq.s32.totalorder %s11, 0
      %p125 = por %p123, %p124
      %p126 = scmp.ne.s32.totalorder %s115, %s118
      %p127 = scmp.eq.s32.totalorder %s16, 2
      %p128 = por %p126, %p127
      %p129 = scmp.ne.s32.totalorder %s118, %s119
      %p130 = scmp.eq.s32.totalorder %s16, 0
      %p131 = por %p129, %p130
      %p132 = scmp.ne.s32.totalorder %s118, %s119
      %p133 = scmp.eq.s32.totalorder %s17, 2
      %p134 = por %p132, %p133
      %p136 = scmp.ne.s32.totalorder %s119, %s135
      %p137 = scmp.eq.s32.totalorder %s17, 0
      %p138 = por %p136, %p137
      %s139 = ssub.s32 %s11, %s18
      %p140 = scmp.eq.s32.totalorder %s139, 0
      %s142 = sadd.s32 %s141, 1
      %s143 = scalar_select %p140, %s141, %s142
      %p146 = pneg %p140
      %p147 = scmp.eq.s32.totalorder %s11, 2
      %p148 = por %p146, %p147
      %p149 = scmp.ne.s32.totalorder %s141, %s144
      %p150 = scmp.eq.s32.totalorder %s11, 0
      %p151 = por %p149, %p150
      %p152 = scmp.ne.s32.totalorder %s141, %s144
      %p153 = scmp.eq.s32.totalorder %s16, 2
      %p154 = por %p152, %p153
      %p155 = scmp.ne.s32.totalorder %s144, %s145
      %p156 = scmp.eq.s32.totalorder %s16, 0
      %p157 = por %p155, %p156
      %p158 = scmp.ne.s32.totalorder %s144, %s145
      %p159 = scmp.eq.s32.totalorder %s17, 2
      %p160 = por %p158, %p159
      %p162 = scmp.ne.s32.totalorder %s145, %s161
      %p163 = scmp.eq.s32.totalorder %s17, 0
      %p164 = por %p162, %p163
      %p165 = scmp.le.s32.totalorder 1, %s11
      %p166 = scmp.lt.s32.totalorder %s11, 4
      %p167 = pnand %p165, %p166
      %p168 = pneg %p167
      // Predicated region
      $region9: #{mixture_net_forward.1} parent=5 // pred_check
        _
      $region10: #{mixture_net_forward.1} parent=5 // pred_check_branch
        %170 = sbr.rel (%p167) target = $region12
      $region11: #{mixture_net_forward.1} parent=5 // pred_region
        %s171 = ssub.s32 %s11, 1
        // Predicated region
        $region13: #{mixture_net_forward.1} parent=11 // pred_check
          %p172 = pneg %p84
        $region14: #{mixture_net_forward.1} parent=11 // pred_check_branch
          %174 = sbr.rel (%p172) target = $region16
        $region15: #{mixture_net_forward.1} parent=11 // pred_region
          _
        $region16: #{mixture_net_forward.1} parent=11 // pred_fallthru
          _
        // Predicated region
        $region17: #{mixture_net_forward.1} parent=11 // pred_check
          %p175 = pneg %p105
        $region18: #{mixture_net_forward.1} parent=11 // pred_check_branch
          %177 = sbr.rel (%p175) target = $region20
        $region19: #{mixture_net_forward.1} parent=11 // pred_region
          _
        $region20: #{mixture_net_forward.1} parent=11 // pred_fallthru
          _
      $region12: #{mixture_net_forward.1} parent=5 // pred_fallthru
        _
      %p178 = scmp.lt.s32.totalorder %s11, 3
      // Predicated region
      $region21: #{mixture_net_forward.1} parent=5 // pred_check
        %p179 = pneg %p178
      $region22: #{mixture_net_forward.1} parent=5 // pred_check_branch
        %181 = sbr.rel (%p179) target = $region24
      $region23: #{mixture_net_forward.1} parent=5 // pred_region
        // Predicated region
        $region25: #{mixture_net_forward.1} parent=23 // pred_check
          %p182 = pneg %p31
        $region26: #{mixture_net_forward.1} parent=23 // pred_check_branch
          %184 = sbr.rel (%p182) target = $region28
        $region27: #{mixture_net_forward.1} parent=23 // pred_region
          %s185 = sand.u32 %s21, 1
          %s186 = sand.u32 %s21, 1
          %s187 = smul.addr %s186, 64
          %s188 = scalar_lea.vmem [#allocation2], %s187
          %s189 = smul.u32 2, %s11
          %s190 = smul.addr %s189, 8
          %s191 = scalar_lea.vmem %s0, %s190
          // Predicated region
          $region29: #{mixture_net_forward.1} parent=27 // pred_check
            _
          $region30: #{mixture_net_forward.1} parent=27 // pred_check_branch
            %193 = sbr.rel (0) target = $region32
          $region31: #{mixture_net_forward.1} parent=27 // pred_region
            // Predicated region
            $region33: #{mixture_net_forward.1} parent=31 // pred_check
              _
            $region34: #{mixture_net_forward.1} parent=31 // pred_check_branch
              %195 = sbr.rel (0) target = $region36
            $region35: #{mixture_net_forward.1} parent=31 // pred_region
              loop: start=0, step=1, limit=1
              $region37: #{mixture_net_forward.1} parent=35 // loop_pre_header
                _
              $region38: #{mixture_net_forward.1} parent=35 // loop_header
                %s197 = sphi 0, %s201
                %p198 = scmp.ge.s32.totalorder %s197, 1
                %s202 = sphi %s191, %s191
                %s203 = sphi %s188, %s188
              $region39: #{mixture_net_forward.1} parent=35 // loop_header_branch
                %200 = sbr.rel (%p198) target = $region43
              $region40: #{mixture_net_forward.1} parent=35 // loop_body
                %v204 = vld [vmem:[%s202] sm:$0xff]
                %205 = vst [vmem:[%s203] sm:$0xff] %v204
                %v206 = vld [vmem:[%s202 + $0x8] sm:$0xff]
                %207 = vst [vmem:[%s203 + $0x8] sm:$0xff] %v206
                %v208 = vld [vmem:[%s202 + $0x30] sm:$0xff]
                %209 = vst [vmem:[%s203 + $0x10] sm:$0xff] %v208
                %v210 = vld [vmem:[%s202 + $0x38] sm:$0xff]
                %211 = vst [vmem:[%s203 + $0x18] sm:$0xff] %v210
                %v212 = vld [vmem:[%s202 + $0x60] sm:$0xff]
                %213 = vst [vmem:[%s203 + $0x20] sm:$0xff] %v212
                %v214 = vld [vmem:[%s202 + $0x68] sm:$0xff]
                %215 = vst [vmem:[%s203 + $0x28] sm:$0xff] %v214
                %v216 = vld [vmem:[%s202 + $0x90] sm:$0xff]
                %217 = vst [vmem:[%s203 + $0x30] sm:$0xff] %v216
                %v218 = vld [vmem:[%s202 + $0x98] sm:$0xff]
                %219 = vst [vmem:[%s203 + $0x38] sm:$0xff] %v218
              $region41: #{mixture_net_forward.1} parent=35 // loop_footer
                %s201 = sadd.s32 1, %s197
              $region42: #{mixture_net_forward.1} parent=35 // loop_footer_branch
                %196 = sbr.rel target = $region38
              $region43: #{mixture_net_forward.1} parent=35 // loop_exit
                _
            $region36: #{mixture_net_forward.1} parent=31 // pred_fallthru
              _
            // Predicated region
            $region44: #{mixture_net_forward.1} parent=31 // pred_check
              _
            $region45: #{mixture_net_forward.1} parent=31 // pred_check_branch
              %221 = sbr.rel target = $region47
            $region46: #{mixture_net_forward.1} parent=31 // pred_region
              _
            $region47: #{mixture_net_forward.1} parent=31 // pred_fallthru
              _
          $region32: #{mixture_net_forward.1} parent=27 // pred_fallthru
            _
          %222 = vnop
        $region28: #{mixture_net_forward.1} parent=23 // pred_fallthru
          _
        // Predicated region
        $region48: #{mixture_net_forward.1} parent=23 // pred_check
          %p223 = pneg %p57
        $region49: #{mixture_net_forward.1} parent=23 // pred_check_branch
          %225 = sbr.rel (%p223) target = $region51
        $region50: #{mixture_net_forward.1} parent=23 // pred_region
          %s226 = sand.u32 %s47, 1
          %s227 = sand.u32 %s47, 1
          %s228 = smul.addr %s227, 64
          %s229 = scalar_lea.vmem [#allocation3], %s228
          %s230 = smul.u32 2, %s11
          %s231 = smul.addr %s230, 8
          %s232 = scalar_lea.vmem %s1, %s231
          // Predicated region
          $region52: #{mixture_net_forward.1} parent=50 // pred_check
            _
          $region53: #{mixture_net_forward.1} parent=50 // pred_check_branch
            %234 = sbr.rel (0) target = $region55
          $region54: #{mixture_net_forward.1} parent=50 // pred_region
            // Predicated region
            $region56: #{mixture_net_forward.1} parent=54 // pred_check
              _
            $region57: #{mixture_net_forward.1} parent=54 // pred_check_branch
              %236 = sbr.rel (0) target = $region59
            $region58: #{mixture_net_forward.1} parent=54 // pred_region
              loop: start=0, step=1, limit=1
              $region60: #{mixture_net_forward.1} parent=58 // loop_pre_header
                _
              $region61: #{mixture_net_forward.1} parent=58 // loop_header
                %s238 = sphi 0, %s242
                %p239 = scmp.ge.s32.totalorder %s238, 1
                %s243 = sphi %s232, %s232
                %s244 = sphi %s229, %s229
              $region62: #{mixture_net_forward.1} parent=58 // loop_header_branch
                %241 = sbr.rel (%p239) target = $region66
              $region63: #{mixture_net_forward.1} parent=58 // loop_body
                %v245 = vld [vmem:[%s243] sm:$0xff]
                %246 = vst [vmem:[%s244] sm:$0xff] %v245
                %v247 = vld [vmem:[%s243 + $0x8] sm:$0xff]
                %248 = vst [vmem:[%s244 + $0x8] sm:$0xff] %v247
                %v249 = vld [vmem:[%s243 + $0x30] sm:$0xff]
                %250 = vst [vmem:[%s244 + $0x10] sm:$0xff] %v249
                %v251 = vld [vmem:[%s243 + $0x38] sm:$0xff]
                %252 = vst [vmem:[%s244 + $0x18] sm:$0xff] %v251
                %v253 = vld [vmem:[%s243 + $0x60] sm:$0xff]
                %254 = vst [vmem:[%s244 + $0x20] sm:$0xff] %v253
                %v255 = vld [vmem:[%s243 + $0x68] sm:$0xff]
                %256 = vst [vmem:[%s244 + $0x28] sm:$0xff] %v255
                %v257 = vld [vmem:[%s243 + $0x90] sm:$0xff]
                %258 = vst [vmem:[%s244 + $0x30] sm:$0xff] %v257
                %v259 = vld [vmem:[%s243 + $0x98] sm:$0xff]
                %260 = vst [vmem:[%s244 + $0x38] sm:$0xff] %v259
              $region64: #{mixture_net_forward.1} parent=58 // loop_footer
                %s242 = sadd.s32 1, %s238
              $region65: #{mixture_net_forward.1} parent=58 // loop_footer_branch
                %237 = sbr.rel target = $region61
              $region66: #{mixture_net_forward.1} parent=58 // loop_exit
                _
            $region59: #{mixture_net_forward.1} parent=54 // pred_fallthru
              _
            // Predicated region
            $region67: #{mixture_net_forward.1} parent=54 // pred_check
              _
            $region68: #{mixture_net_forward.1} parent=54 // pred_check_branch
              %262 = sbr.rel target = $region70
            $region69: #{mixture_net_forward.1} parent=54 // pred_region
              _
            $region70: #{mixture_net_forward.1} parent=54 // pred_fallthru
              _
          $region55: #{mixture_net_forward.1} parent=50 // pred_fallthru
            _
          %263 = vnop
        $region51: #{mixture_net_forward.1} parent=23 // pred_fallthru
          _
        // Predicated region
        $region71: #{mixture_net_forward.1} parent=23 // pred_check
          %p264 = pneg %p125
        $region72: #{mixture_net_forward.1} parent=23 // pred_check_branch
          %266 = sbr.rel (%p264) target = $region74
        $region73: #{mixture_net_forward.1} parent=23 // pred_region
          %s267 = smul.u32 2, %s11
          %p268 = scmp.lt.s32.totalorder %s267, 5
          %s269 = scalar_select %p268, %s267, 5
          %s270 = scalar_lea.vmem %s4, %s269
          %s271 = smul.u32 2, %s11
        $region74: #{mixture_net_forward.1} parent=23 // pred_fallthru
          _
      $region24: #{mixture_net_forward.1} parent=5 // pred_fallthru
        _
      %p272 = scmp.le.s32.totalorder 1, %s11
      %p273 = scmp.lt.s32.totalorder %s11, 4
      %p274 = pnand %p272, %p273
      %p275 = pneg %p274
      // Predicated region
      $region75: #{mixture_net_forward.1} parent=5 // pred_check
        _
      $region76: #{mixture_net_forward.1} parent=5 // pred_check_branch
        %277 = sbr.rel (%p274) target = $region78
      $region77: #{mixture_net_forward.1} parent=5 // pred_region
        %s278 = ssub.s32 %s11, 1
        %s279 = sand.u32 %s24, 1
        %s280 = sand.u32 %s24, 1
        %s281 = smul.addr %s280, 64
        %s282 = scalar_lea.vmem [#allocation2], %s281
        // Predicated region
        $region79: #{mixture_net_forward.1} parent=77 // pred_check
          %p283 = pneg %p37
        $region80: #{mixture_net_forward.1} parent=77 // pred_check_branch
          %285 = sbr.rel (%p283) target = $region82
        $region81: #{mixture_net_forward.1} parent=77 // pred_region
          _
        $region82: #{mixture_net_forward.1} parent=77 // pred_fallthru
          _
        %s286 = sand.u32 %s50, 1
        %s287 = sand.u32 %s50, 1
        %s288 = smul.addr %s287, 64
        %s289 = scalar_lea.vmem [#allocation3], %s288
        // Predicated region
        $region83: #{mixture_net_forward.1} parent=77 // pred_check
          %p290 = pneg %p63
        $region84: #{mixture_net_forward.1} parent=77 // pred_check_branch
          %292 = sbr.rel (%p290) target = $region86
        $region85: #{mixture_net_forward.1} parent=77 // pred_region
          _
        $region86: #{mixture_net_forward.1} parent=77 // pred_fallthru
          _
        %s293 = sand.u32 %s24, 1
        %s294 = sand.u32 %s24, 1
        %s295 = smul.addr %s294, 64
        %s296 = scalar_lea.vmem [#allocation2], %s295
        %p297 = pneg %p37
        %p298 = pneg %p34
        %s299 = sand.u32 %s50, 1
        %s300 = sand.u32 %s50, 1
        %s301 = smul.addr %s300, 64
        %s302 = scalar_lea.vmem [#allocation3], %s301
        %p303 = pneg %p63
        %p304 = pneg %p60
        %p305 = pneg %p84
        %p306 = pneg %p81
        %p307 = pneg %p105
        %p308 = pneg %p102
        %s309 = smul.u32 2, %s16
        %p310 = scmp.lt.s32.totalorder %s309, 5
        %s311 = scalar_select %p310, %s309, 5
        %s312 = scalar_lea.vmem %s4, %s311
        %p313 = pneg %p131
        %p314 = pneg %p128
        %p315 = pneg %p157
        %p316 = pneg %p154
        %s317 = smul.u32 2, %s16
        %p318 = scmp.lt.s32.totalorder %s317, 5
        %s319 = scalar_select %p318, %s317, 5
        %s320 = scalar_lea.vmem %s5, %s319
        %s321 = smul.u32 2, %s16
        %s322 = smul.u32 2, %s16
        %s323 = smul.u32 2, %s16
        %p324 = scmp.lt.s32.totalorder %s323, 5
        %s325 = scalar_select %p324, %s323, 5
        %s326 = scalar_lea.vmem %s4, %s325
        %s327 = smul.u32 2, %s16
        %s328 = smul.u32 2, %s16
        %p329 = scmp.lt.s32.totalorder %s328, 5
        %s330 = scalar_select %p329, %s328, 5
        %s331 = scalar_lea.vmem %s5, %s330
        %s332 = smul.u32 2, %s16
        %v333 = vld [vmem:[%s282] sm:$0xff]
        %v334 = vld [vmem:[%s282 + $0x8] sm:$0xff]
        %v335 = vld [vmem:[%s282 + $0x10] sm:$0xff]
        %v336 = vld [vmem:[%s282 + $0x18] sm:$0xff]
        %v337 = vld [vmem:[%s282 + $0x20] sm:$0xff]
        %v338 = vld [vmem:[%s282 + $0x28] sm:$0xff]
        %v339 = vld [vmem:[%s282 + $0x30] sm:$0xff]
        %v340 = vld [vmem:[%s282 + $0x38] sm:$0xff]
        %v341 = vld [vmem:[%s289] sm:$0xff]
        %v342 = vld [vmem:[%s289 + $0x8] sm:$0xff]
        %v343 = vld [vmem:[%s289 + $0x10] sm:$0xff]
        %v344 = vld [vmem:[%s289 + $0x18] sm:$0xff]
        %v345 = vld [vmem:[%s289 + $0x20] sm:$0xff]
        %v346 = vld [vmem:[%s289 + $0x28] sm:$0xff]
        %v347 = vld [vmem:[%s289 + $0x30] sm:$0xff]
        %v348 = vld [vmem:[%s289 + $0x38] sm:$0xff]
        %v349 = vld [vmem:[%s2] sm:$0xff]
        %v350 = vld [vmem:[%s2 + $0x8] sm:$0xff]
        %v351 = vld [vmem:[%s2 + $0x10] sm:$0xff]
        %v352 = vld [vmem:[%s2 + $0x18] sm:$0xff]
        %v353 = vld [vmem:[%s2 + $0x20] sm:$0xff]
        %v354 = vld [vmem:[%s2 + $0x28] sm:$0xff]
        %v355 = vld [vmem:[%s2 + $0x30] sm:$0xff]
        %v356 = vld [vmem:[%s2 + $0x38] sm:$0xff]
        %v357 = vld [vmem:[%s2 + $0x40] sm:$0xff]
        %v358 = vld [vmem:[%s2 + $0x48] sm:$0xff]
        %v359 = vld [vmem:[%s2 + $0x50] sm:$0xff]
        %v360 = vld [vmem:[%s2 + $0x58] sm:$0xff]
        %v361 = vld [vmem:[%s2 + $0x60] sm:$0xff]
        %v362 = vld [vmem:[%s2 + $0x68] sm:$0xff]
        %v363 = vld [vmem:[%s2 + $0x70] sm:$0xff]
        %v364 = vld [vmem:[%s2 + $0x78] sm:$0xff]
        %v365 = vld [vmem:[%s2 + $0x80] sm:$0xff]
        %v366 = vld [vmem:[%s2 + $0x88] sm:$0xff]
        %v367 = vld [vmem:[%s2 + $0x90] sm:$0xff]
        %v368 = vld [vmem:[%s2 + $0x98] sm:$0xff]
        %v369 = vld [vmem:[%s2 + $0xa0] sm:$0xff]
        %v370 = vld [vmem:[%s2 + $0xa8] sm:$0xff]
        %v371 = vld [vmem:[%s2 + $0xb0] sm:$0xff]
        %v372 = vld [vmem:[%s2 + $0xb8] sm:$0xff]
        %v373 = vld [vmem:[%s2 + $0xc0] sm:$0xff]
        %v374 = vld [vmem:[%s2 + $0xc8] sm:$0xff]
        %v375 = vld [vmem:[%s2 + $0xd0] sm:$0xff]
        %v376 = vld [vmem:[%s2 + $0xd8] sm:$0xff]
        %v377 = vld [vmem:[%s2 + $0xe0] sm:$0xff]
        %v378 = vld [vmem:[%s2 + $0xe8] sm:$0xff]
        %v379 = vld [vmem:[%s2 + $0xf0] sm:$0xff]
        %v380 = vld [vmem:[%s2 + $0xf8] sm:$0xff]
        %vm381 = vcmask 261120
        %v383 = vsel %vm381, %v349, 0
        %v386 = vsel %vm381, %v350, 0
        %v389 = vsel %vm381, %v351, 0
        %v392 = vsel %vm381, %v352, 0
        %v395 = vsel %vm381, %v353, 0
        %v398 = vsel %vm381, %v354, 0
        %v401 = vsel %vm381, %v355, 0
        %v404 = vsel %vm381, %v356, 0
        %v407 = vsel %vm381, %v357, 0
        %v410 = vsel %vm381, %v358, 0
        %v413 = vsel %vm381, %v359, 0
        %v416 = vsel %vm381, %v360, 0
        %v419 = vsel %vm381, %v361, 0
        %v422 = vsel %vm381, %v362, 0
        %v425 = vsel %vm381, %v363, 0
        %v428 = vsel %vm381, %v364, 0
        %v431 = vsel %vm381, %v365, 0
        %v434 = vsel %vm381, %v366, 0
        %v437 = vsel %vm381, %v367, 0
        %v440 = vsel %vm381, %v368, 0
        %v443 = vsel %vm381, %v369, 0
        %v446 = vsel %vm381, %v370, 0
        %v449 = vsel %vm381, %v371, 0
        %v452 = vsel %vm381, %v372, 0
        %v455 = vsel %vm381, %v373, 0
        %v458 = vsel %vm381, %v374, 0
        %v461 = vsel %vm381, %v375, 0
        %v464 = vsel %vm381, %v376, 0
        %v467 = vsel %vm381, %v377, 0
        %v470 = vsel %vm381, %v378, 0
        %v473 = vsel %vm381, %v379, 0
        %v476 = vsel %vm381, %v380, 0
        %478 = vmatprep.subr.mxu0 %v334
        %479 = vmatpush1.msra.mxu0 %v333
        %480 = vmatprep.subr.mxu0 %v336
        %481 = vmatpush1.msra.mxu0 %v335
        %482 = vmatprep.subr.mxu0 %v338
        %483 = vmatpush1.msra.mxu0 %v337
        %484 = vmatprep.subr.mxu0 %v340
        %485 = vmatpush1.msra.mxu0 %v339
        %486 = vmatprep.subr.mxu0 0.0
        %487 = vmatpush1.msra.mxu0 0.0
        %488 = vmatprep.subr.mxu0 0.0
        %489 = vmatpush1.msra.mxu0 0.0
        %490 = vmatprep.subr.mxu0 0.0
        %491 = vmatpush1.msra.mxu0 0.0
        %492 = vmatprep.subr.mxu0 0.0
        %493 = vmatpush1.msra.mxu0 0.0
        %494 = vmatprep.subr.mxu0 0.0
        %495 = vmatpush1.msra.mxu0 0.0
        %496 = vmatprep.subr.mxu0 0.0
        %497 = vmatpush1.msra.mxu0 0.0
        %498 = vmatprep.subr.mxu0 0.0
        %499 = vmatpush1.msra.mxu0 0.0
        %500 = vmatprep.subr.mxu0 0.0
        %501 = vmatpush1.msra.mxu0 0.0
        %502 = vmatprep.subr.mxu0 0.0
        %503 = vmatpush1.msra.mxu0 0.0
        %504 = vmatprep.subr.mxu0 0.0
        %505 = vmatpush1.msra.mxu0 0.0
        %506 = vmatprep.subr.mxu0 0.0
        %507 = vmatpush1.msra.mxu0 0.0
        %508 = vmatprep.subr.mxu0 0.0
        %509 = vmatpush1.msra.mxu0 0.0
        %510 = vmatprep.subr.mxu0 0.0
        %511 = vmatpush1.msra.mxu0 0.0
        %512 = vmatprep.subr.mxu0 0.0
        %513 = vmatpush1.msra.mxu0 0.0
        %514 = vmatprep.subr.mxu0 0.0
        %515 = vmatpush1.msra.mxu0 0.0
        %516 = vmatprep.subr.mxu0 0.0
        %517 = vmatpush1.msra.mxu0 0.0
        %518 = vmatprep.subr.mxu0 0.0
        %519 = vmatpush1.msra.mxu0 0.0
        %520 = vmatprep.subr.mxu0 0.0
        %521 = vmatpush1.msra.mxu0 0.0
        %522 = vmatprep.subr.mxu0 0.0
        %523 = vmatpush1.msra.mxu0 0.0
        %524 = vmatprep.subr.mxu0 0.0
        %525 = vmatpush1.msra.mxu0 0.0
        %526 = vmatprep.subr.mxu0 0.0
        %527 = vmatpush1.msra.mxu0 0.0
        %528 = vmatprep.subr.mxu0 0.0
        %529 = vmatpush1.msra.mxu0 0.0
        %530 = vmatprep.subr.mxu0 0.0
        %531 = vmatpush1.msra.mxu0 0.0
        %532 = vmatprep.subr.mxu0 0.0
        %533 = vmatpush1.msra.mxu0 0.0
        %534 = vmatprep.subr.mxu0 0.0
        %535 = vmatpush1.msra.mxu0 0.0
        %536 = vmatprep.subr.mxu0 0.0
        %537 = vmatpush1.msra.mxu0 0.0
        %538 = vmatprep.subr.mxu0 0.0
        %539 = vmatpush1.msra.mxu0 0.0
        %540 = vmatprep.subr.mxu0 0.0
        %541 = vmatpush1.msra.mxu0 0.0
        %542 = vmatprep.mubr.f32.mxu0 0.0
        %543 = vmatmul.mubr.f32.gmra.mrb[0].mxu0 %v383
        %v544 = vpop.f32.mrb[0].mxu0
        %v545 = vadd.f32 0.0, %v544
        %v546 = vpop.f32.mrb[0].mxu0
        %v547 = vadd.f32 0.0, %v546
        %548 = vmatprep.mubr.f32.mxu0 0.0
        %549 = vmatmul.mubr.f32.gmra.mrb[0].mxu0 %v386
        %v550 = vpop.f32.mrb[0].mxu0
        %v551 = vadd.f32 0.0, %v550
        %v552 = vpop.f32.mrb[0].mxu0
        %v553 = vadd.f32 0.0, %v552
        %554 = vmatprep.mubr.f32.mxu0 0.0
        %555 = vmatmul.mubr.f32.gmra.mrb[0].mxu0 %v389
        %v556 = vpop.f32.mrb[0].mxu0
        %v557 = vadd.f32 0.0, %v556
        %v558 = vpop.f32.mrb[0].mxu0
        %v559 = vadd.f32 0.0, %v558
        %560 = vmatprep.mubr.f32.mxu0 0.0
        %561 = vmatmul.mubr.f32.gmra.mrb[0].mxu0 %v392
        %v562 = vpop.f32.mrb[0].mxu0
        %v563 = vadd.f32 0.0, %v562
        %v564 = vpop.f32.mrb[0].mxu0
        %v565 = vadd.f32 0.0, %v564
        %566 = vmatprep.mubr.f32.mxu0 0.0
        %567 = vmatmul.mubr.f32.gmra.mrb[0].mxu0 %v395
        %v568 = vpop.f32.mrb[0].mxu0
        %v569 = vadd.f32 0.0, %v568
        %v570 = vpop.f32.mrb[0].mxu0
        %v571 = vadd.f32 0.0, %v570
        %572 = vmatprep.mubr.f32.mxu0 0.0
        %573 = vmatmul.mubr.f32.gmra.mrb[0].mxu0 %v398
        %v574 = vpop.f32.mrb[0].mxu0
        %v575 = vadd.f32 0.0, %v574
        %v576 = vpop.f32.mrb[0].mxu0
        %v577 = vadd.f32 0.0, %v576
        %578 = vmatprep.mubr.f32.mxu0 0.0
        %579 = vmatmul.mubr.f32.gmra.mrb[0].mxu0 %v401
        %v580 = vpop.f32.mrb[0].mxu0
        %v581 = vadd.f32 0.0, %v580
        %v582 = vpop.f32.mrb[0].mxu0
        %v583 = vadd.f32 0.0, %v582
        %584 = vmatprep.mubr.f32.mxu0 0.0
        %585 = vmatmul.mubr.f32.gmra.mrb[0].mxu0 %v404
        %v586 = vpop.f32.mrb[0].mxu0
        %v587 = vadd.f32 0.0, %v586
        %v588 = vpop.f32.mrb[0].mxu0
        %v589 = vadd.f32 0.0, %v588
        %590 = vmatprep.mubr.f32.mxu0 0.0
        %591 = vmatmul.mubr.f32.gmra.mrb[0].mxu0 %v407
        %v592 = vpop.f32.mrb[0].mxu0
        %v593 = vadd.f32 0.0, %v592
        %v594 = vpop.f32.mrb[0].mxu0
        %v595 = vadd.f32 0.0, %v594
        %596 = vmatprep.mubr.f32.mxu0 0.0
        %597 = vmatmul.mubr.f32.gmra.mrb[0].mxu0 %v410
        %v598 = vpop.f32.mrb[0].mxu0
        %v599 = vadd.f32 0.0, %v598
        %v600 = vpop.f32.mrb[0].mxu0
        %v601 = vadd.f32 0.0, %v600
        %602 = vmatprep.mubr.f32.mxu0 0.0
        %603 = vmatmul.mubr.f32.gmra.mrb[0].mxu0 %v413
        %v604 = vpop.f32.mrb[0].mxu0
        %v605 = vadd.f32 0.0, %v604
        %v606 = vpop.f32.mrb[0].mxu0
        %v607 = vadd.f32 0.0, %v606
        %608 = vmatprep.mubr.f32.mxu0 0.0
        %609 = vmatmul.mubr.f32.gmra.mrb[0].mxu0 %v416
        %v610 = vpop.f32.mrb[0].mxu0
        %v611 = vadd.f32 0.0, %v610
        %v612 = vpop.f32.mrb[0].mxu0
        %v613 = vadd.f32 0.0, %v612
        %614 = vmatprep.mubr.f32.mxu0 0.0
        %615 = vmatmul.mubr.f32.gmra.mrb[0].mxu0 %v419
        %v616 = vpop.f32.mrb[0].mxu0
        %v617 = vadd.f32 0.0, %v616
        %v618 = vpop.f32.mrb[0].mxu0
        %v619 = vadd.f32 0.0, %v618
        %620 = vmatprep.mubr.f32.mxu0 0.0
        %621 = vmatmul.mubr.f32.gmra.mrb[0].mxu0 %v422
        %v622 = vpop.f32.mrb[0].mxu0
        %v623 = vadd.f32 0.0, %v622
        %v624 = vpop.f32.mrb[0].mxu0
        %v625 = vadd.f32 0.0, %v624
        %626 = vmatprep.mubr.f32.mxu0 0.0
        %627 = vmatmul.mubr.f32.gmra.mrb[0].mxu0 %v425
        %v628 = vpop.f32.mrb[0].mxu0
        %v629 = vadd.f32 0.0, %v628
        %v630 = vpop.f32.mrb[0].mxu0
        %v631 = vadd.f32 0.0, %v630
        %632 = vmatprep.mubr.f32.mxu0 0.0
        %633 = vmatmul.mubr.f32.gmra.mrb[0].mxu0 %v428
        %v634 = vpop.f32.mrb[0].mxu0
        %v635 = vadd.f32 0.0, %v634
        %v636 = vpop.f32.mrb[0].mxu0
        %v637 = vadd.f32 0.0, %v636
        %638 = vmatprep.mubr.f32.mxu0 0.0
        %639 = vmatmul.mubr.f32.gmra.mrb[0].mxu0 %v431
        %v640 = vpop.f32.mrb[0].mxu0
        %v641 = vadd.f32 0.0, %v640
        %v642 = vpop.f32.mrb[0].mxu0
        %v643 = vadd.f32 0.0, %v642
        %644 = vmatprep.mubr.f32.mxu0 0.0
        %645 = vmatmul.mubr.f32.gmra.mrb[0].mxu0 %v434
        %v646 = vpop.f32.mrb[0].mxu0
        %v647 = vadd.f32 0.0, %v646
        %v648 = vpop.f32.mrb[0].mxu0
        %v649 = vadd.f32 0.0, %v648
        %650 = vmatprep.mubr.f32.mxu0 0.0
        %651 = vmatmul.mubr.f32.gmra.mrb[0].mxu0 %v437
        %v652 = vpop.f32.mrb[0].mxu0
        %v653 = vadd.f32 0.0, %v652
        %v654 = vpop.f32.mrb[0].mxu0
        %v655 = vadd.f32 0.0, %v654
        %656 = vmatprep.mubr.f32.mxu0 0.0
        %657 = vmatmul.mubr.f32.gmra.mrb[0].mxu0 %v440
        %v658 = vpop.f32.mrb[0].mxu0
        %v659 = vadd.f32 0.0, %v658
        %v660 = vpop.f32.mrb[0].mxu0
        %v661 = vadd.f32 0.0, %v660
        %662 = vmatprep.mubr.f32.mxu0 0.0
        %663 = vmatmul.mubr.f32.gmra.mrb[0].mxu0 %v443
        %v664 = vpop.f32.mrb[0].mxu0
        %v665 = vadd.f32 0.0, %v664
        %v666 = vpop.f32.mrb[0].mxu0
        %v667 = vadd.f32 0.0, %v666
        %668 = vmatprep.mubr.f32.mxu0 0.0
        %669 = vmatmul.mubr.f32.gmra.mrb[0].mxu0 %v446
        %v670 = vpop.f32.mrb[0].mxu0
        %v671 = vadd.f32 0.0, %v670
        %v672 = vpop.f32.mrb[0].mxu0
        %v673 = vadd.f32 0.0, %v672
        %674 = vmatprep.mubr.f32.mxu0 0.0
        %675 = vmatmul.mubr.f32.gmra.mrb[0].mxu0 %v449
        %v676 = vpop.f32.mrb[0].mxu0
        %v677 = vadd.f32 0.0, %v676
        %v678 = vpop.f32.mrb[0].mxu0
        %v679 = vadd.f32 0.0, %v678
        %680 = vmatprep.mubr.f32.mxu0 0.0
        %681 = vmatmul.mubr.f32.gmra.mrb[0].mxu0 %v452
        %v682 = vpop.f32.mrb[0].mxu0
        %v683 = vadd.f32 0.0, %v682
        %v684 = vpop.f32.mrb[0].mxu0
        %v685 = vadd.f32 0.0, %v684
        %686 = vmatprep.mubr.f32.mxu0 0.0
        %687 = vmatmul.mubr.f32.gmra.mrb[0].mxu0 %v455
        %v688 = vpop.f32.mrb[0].mxu0
        %v689 = vadd.f32 0.0, %v688
        %v690 = vpop.f32.mrb[0].mxu0
        %v691 = vadd.f32 0.0, %v690
        %692 = vmatprep.mubr.f32.mxu0 0.0
        %693 = vmatmul.mubr.f32.gmra.mrb[0].mxu0 %v458
        %v694 = vpop.f32.mrb[0].mxu0
        %v695 = vadd.f32 0.0, %v694
        %v696 = vpop.f32.mrb[0].mxu0
        %v697 = vadd.f32 0.0, %v696
        %698 = vmatprep.mubr.f32.mxu0 0.0
        %699 = vmatmul.mubr.f32.gmra.mrb[0].mxu0 %v461
        %v700 = vpop.f32.mrb[0].mxu0
        %v701 = vadd.f32 0.0, %v700
        %v702 = vpop.f32.mrb[0].mxu0
        %v703 = vadd.f32 0.0, %v702
        %704 = vmatprep.mubr.f32.mxu0 0.0
        %705 = vmatmul.mubr.f32.gmra.mrb[0].mxu0 %v464
        %v706 = vpop.f32.mrb[0].mxu0
        %v707 = vadd.f32 0.0, %v706
        %v708 = vpop.f32.mrb[0].mxu0
        %v709 = vadd.f32 0.0, %v708
        %710 = vmatprep.mubr.f32.mxu0 0.0
        %711 = vmatmul.mubr.f32.gmra.mrb[0].mxu0 %v467
        %v712 = vpop.f32.mrb[0].mxu0
        %v713 = vadd.f32 0.0, %v712
        %v714 = vpop.f32.mrb[0].mxu0
        %v715 = vadd.f32 0.0, %v714
        %716 = vmatprep.mubr.f32.mxu0 0.0
        %717 = vmatmul.mubr.f32.gmra.mrb[0].mxu0 %v470
        %v718 = vpop.f32.mrb[0].mxu0
        %v719 = vadd.f32 0.0, %v718
        %v720 = vpop.f32.mrb[0].mxu0
        %v721 = vadd.f32 0.0, %v720
        %722 = vmatprep.mubr.f32.mxu0 0.0
        %723 = vmatmul.mubr.f32.gmra.mrb[0].mxu0 %v473
        %v724 = vpop.f32.mrb[0].mxu0
        %v725 = vadd.f32 0.0, %v724
        %v726 = vpop.f32.mrb[0].mxu0
        %v727 = vadd.f32 0.0, %v726
        %728 = vmatprep.mubr.f32.mxu0 0.0
        %729 = vmatmul.mubr.f32.gmra.mrb[0].mxu0 %v476
        %v730 = vpop.f32.mrb[0].mxu0
        %v731 = vadd.f32 0.0, %v730
        %v732 = vpop.f32.mrb[0].mxu0
        %v733 = vadd.f32 0.0, %v732
        %734 = vdwg.mxu0
        %v735 = vmul.f32 %v545, %v341
        %v736 = vmul.f32 %v547, %v342
        %v737 = vmul.f32 %v551, %v343
        %v738 = vmul.f32 %v553, %v344
        %v739 = vmul.f32 %v557, %v345
        %v740 = vmul.f32 %v559, %v346
        %v741 = vmul.f32 %v563, %v347
        %v742 = vmul.f32 %v565, %v348
        %v743 = vmul.f32 %v569, %v341
        %v744 = vmul.f32 %v571, %v342
        %v745 = vmul.f32 %v575, %v343
        %v746 = vmul.f32 %v577, %v344
        %v747 = vmul.f32 %v581, %v345
        %v748 = vmul.f32 %v583, %v346
        %v749 = vmul.f32 %v587, %v347
        %v750 = vmul.f32 %v589, %v348
        %v751 = vmul.f32 %v593, %v341
        %v752 = vmul.f32 %v595, %v342
        %v753 = vmul.f32 %v599, %v343
        %v754 = vmul.f32 %v601, %v344
        %v755 = vmul.f32 %v605, %v345
        %v756 = vmul.f32 %v607, %v346
        %v757 = vmul.f32 %v611, %v347
        %v758 = vmul.f32 %v613, %v348
        %v759 = vmul.f32 %v617, %v341
        %v760 = vmul.f32 %v619, %v342
        %v761 = vmul.f32 %v623, %v343
        %v762 = vmul.f32 %v625, %v344
        %v763 = vmul.f32 %v629, %v345
        %v764 = vmul.f32 %v631, %v346
        %v765 = vmul.f32 %v635, %v347
        %v766 = vmul.f32 %v637, %v348
        %v767 = vmul.f32 %v641, %v341
        %v768 = vmul.f32 %v643, %v342
        %v769 = vmul.f32 %v647, %v343
        %v770 = vmul.f32 %v649, %v344
        %v771 = vmul.f32 %v653, %v345
        %v772 = vmul.f32 %v655, %v346
        %v773 = vmul.f32 %v659, %v347
        %v774 = vmul.f32 %v661, %v348
        %v775 = vmul.f32 %v665, %v341
        %v776 = vmul.f32 %v667, %v342
        %v777 = vmul.f32 %v671, %v343
        %v778 = vmul.f32 %v673, %v344
        %v779 = vmul.f32 %v677, %v345
        %v780 = vmul.f32 %v679, %v346
        %v781 = vmul.f32 %v683, %v347
        %v782 = vmul.f32 %v685, %v348
        %v783 = vmul.f32 %v689, %v341
        %v784 = vmul.f32 %v691, %v342
        %v785 = vmul.f32 %v695, %v343
        %v786 = vmul.f32 %v697, %v344
        %v787 = vmul.f32 %v701, %v345
        %v788 = vmul.f32 %v703, %v346
        %v789 = vmul.f32 %v707, %v347
        %v790 = vmul.f32 %v709, %v348
        %v791 = vmul.f32 %v713, %v341
        %v792 = vmul.f32 %v715, %v342
        %v793 = vmul.f32 %v719, %v343
        %v794 = vmul.f32 %v721, %v344
        %v795 = vmul.f32 %v725, %v345
        %v796 = vmul.f32 %v727, %v346
        %v797 = vmul.f32 %v731, %v347
        %v798 = vmul.f32 %v733, %v348
        %v799 = vld [vmem:[%s3] sm:$0xff]
        %v800 = vld [vmem:[%s3 + $0x8] sm:$0xff]
        %801 = vmatprep.subr.mxu0 %v736
        %802 = vmatpush1.msra.mxu0 %v735
        %803 = vmatprep.subr.mxu0 %v738
        %804 = vmatpush1.msra.mxu0 %v737
        %805 = vmatprep.subr.mxu0 %v740
        %806 = vmatpush1.msra.mxu0 %v739
        %807 = vmatprep.subr.mxu0 %v742
        %808 = vmatpush1.msra.mxu0 %v741
        %809 = vmatprep.subr.mxu0 %v744
        %810 = vmatpush1.msra.mxu0 %v743
        %811 = vmatprep.subr.mxu0 %v746
        %812 = vmatpush1.msra.mxu0 %v745
        %813 = vmatprep.subr.mxu0 %v748
        %814 = vmatpush1.msra.mxu0 %v747
        %815 = vmatprep.subr.mxu0 %v750
        %816 = vmatpush1.msra.mxu0 %v749
        %817 = vmatprep.subr.mxu0 %v752
        %818 = vmatpush1.msra.mxu0 %v751
        %819 = vmatprep.subr.mxu0 %v754
        %820 = vmatpush1.msra.mxu0 %v753
        %821 = vmatprep.subr.mxu0 %v756
        %822 = vmatpush1.msra.mxu0 %v755
        %823 = vmatprep.subr.mxu0 %v758
        %824 = vmatpush1.msra.mxu0 %v757
        %825 = vmatprep.subr.mxu0 %v760
        %826 = vmatpush1.msra.mxu0 %v759
        %827 = vmatprep.subr.mxu0 %v762
        %828 = vmatpush1.msra.mxu0 %v761
        %829 = vmatprep.subr.mxu0 %v764
        %830 = vmatpush1.msra.mxu0 %v763
        %831 = vmatprep.subr.mxu0 %v766
        %832 = vmatpush1.msra.mxu0 %v765
        %833 = vmatprep.subr.mxu0 %v768
        %834 = vmatpush1.msra.mxu0 %v767
        %835 = vmatprep.subr.mxu0 %v770
        %836 = vmatpush1.msra.mxu0 %v769
        %837 = vmatprep.subr.mxu0 %v772
        %838 = vmatpush1.msra.mxu0 %v771
        %839 = vmatprep.subr.mxu0 %v774
        %840 = vmatpush1.msra.mxu0 %v773
        %841 = vmatprep.subr.mxu0 %v776
        %842 = vmatpush1.msra.mxu0 %v775
        %843 = vmatprep.subr.mxu0 %v778
        %844 = vmatpush1.msra.mxu0 %v777
        %845 = vmatprep.subr.mxu0 %v780
        %846 = vmatpush1.msra.mxu0 %v779
        %847 = vmatprep.subr.mxu0 %v782
        %848 = vmatpush1.msra.mxu0 %v781
        %849 = vmatprep.subr.mxu0 %v784
        %850 = vmatpush1.msra.mxu0 %v783
        %851 = vmatprep.subr.mxu0 %v786
        %852 = vmatpush1.msra.mxu0 %v785
        %853 = vmatprep.subr.mxu0 %v788
        %854 = vmatpush1.msra.mxu0 %v787
        %855 = vmatprep.subr.mxu0 %v790
        %856 = vmatpush1.msra.mxu0 %v789
        %857 = vmatprep.subr.mxu0 %v792
        %858 = vmatpush1.msra.mxu0 %v791
        %859 = vmatprep.subr.mxu0 %v794
        %860 = vmatpush1.msra.mxu0 %v793
        %861 = vmatprep.subr.mxu0 %v796
        %862 = vmatpush1.msra.mxu0 %v795
        %863 = vmatprep.subr.mxu0 %v798
        %864 = vmatpush1.msra.mxu0 %v797
        %865 = vmatprep.mubr.f32.mxu0 %v800
        %866 = vmatmul.mubr.f32.gmra.mrb[0].mxu0 %v799
        %v867 = vpop.f32.mrb[0].mxu0
        %v868 = vadd.f32 0.0, %v867
        %v869 = vpop.f32.mrb[0].mxu0
        %v870 = vadd.f32 0.0, %v869
        %871 = vdwg.mxu0
        %v874 = vrot.slane %v868, 1
        %v875 = vrot.slane %v870, 1
        %v878 = vmax.f32 %v868, %v874
        %v879 = vmax.f32 %v870, %v875
        %v880 = vrot.slane %v868, 2
        %v881 = vrot.slane %v870, 2
        %v884 = vmax.f32 %v878, %v880
        %v885 = vmax.f32 %v879, %v881
        %v886 = vrot.slane %v868, 3
        %v887 = vrot.slane %v870, 3
        %v890 = vmax.f32 %v884, %v886
        %v891 = vmax.f32 %v885, %v887
        %v892 = vsub.f32 %v868, %v890
        %v893 = vsub.f32 %v870, %v891
        %v894 = vmul.f32 %v892, 1.442695
        %v895 = vpow.pop %v894
        %v896 = vmul.f32 %v893, 1.442695
        %v897 = vpow.pop %v896
        %v900 = vrot.slane %v890, 7
        %v901 = vrot.slane %v891, 7
        %v904 = vsub.f32 %v868, %v900
        %v905 = vsub.f32 %v870, %v901
        %v906 = vmul.f32 %v904, 1.442695
        %v907 = vpow.pop %v906
        %v908 = vmul.f32 %v905, 1.442695
        %v909 = vpow.pop %v908
        %v910 = vrot.slane %v890, 6
        %v911 = vrot.slane %v891, 6
        %v914 = vsub.f32 %v868, %v910
        %v915 = vsub.f32 %v870, %v911
        %v916 = vmul.f32 %v914, 1.442695
        %v917 = vpow.pop %v916
        %v918 = vmul.f32 %v915, 1.442695
        %v919 = vpow.pop %v918
        %v920 = vrot.slane %v890, 5
        %v921 = vrot.slane %v891, 5
        %v924 = vsub.f32 %v868, %v920
        %v925 = vsub.f32 %v870, %v921
        %v926 = vmul.f32 %v924, 1.442695
        %v927 = vpow.pop %v926
        %v928 = vmul.f32 %v925, 1.442695
        %v929 = vpow.pop %v928
        %v930 = vrot.slane %v868, 4
        %v931 = vrot.slane %v870, 4
        %v934 = vmul.f32 %v895, %v930
        %v935 = vmul.f32 %v897, %v931
        %v938 = vrot.slane %v907, 1
        %v939 = vrot.slane %v909, 1
        %v942 = vadd.f32 %v895, %v938
        %v943 = vadd.f32 %v897, %v939
        %v944 = vmul.f32 %v907, %v930
        %v945 = vmul.f32 %v909, %v931
        %v948 = vrot.slane %v944, 1
        %v949 = vrot.slane %v945, 1
        %v952 = vadd.f32 %v934, %v948
        %v953 = vadd.f32 %v935, %v949
        %v956 = vrot.slane %v917, 2
        %v957 = vrot.slane %v919, 2
        %v960 = vadd.f32 %v942, %v956
        %v961 = vadd.f32 %v943, %v957
        %v962 = vmul.f32 %v917, %v930
        %v963 = vmul.f32 %v919, %v931
        %v966 = vrot.slane %v962, 2
        %v967 = vrot.slane %v963, 2
        %v970 = vadd.f32 %v952, %v966
        %v971 = vadd.f32 %v953, %v967
        %v974 = vrot.slane %v927, 3
        %v975 = vrot.slane %v929, 3
        %v978 = vadd.f32 %v960, %v974
        %v979 = vadd.f32 %v961, %v975
        %v980 = vmul.f32 %v927, %v930
        %v981 = vmul.f32 %v929, %v931
        %v984 = vrot.slane %v980, 3
        %v985 = vrot.slane %v981, 3
        %v988 = vadd.f32 %v970, %v984
        %v989 = vadd.f32 %v971, %v985
        %v990 = vrcp.pop %v978
        %v991 = vrcp.pop %v979
        %v992 = vmul.f32 %v988, %v990
        %v993 = vmul.f32 %v989, %v991
        %v994 = vld [vmem:[%s326] sm:$0x3]
        %v996 = vlaneseq
        %v997 = vshrl.u32 %v996, 7
        %v998 = vsub.s32 0, %v997
        %v999 = vrot.slane %v994, %v998
        %v1000 = vlaneseq
        %v1001 = vshrl.u32 %v1000, 7
        %v1002 = vsub.s32 1, %v1001
        %v1003 = vrot.slane %v994, %v1002
        %v1006 = vadd.f32 %v992, %v999
        %v1007 = vadd.f32 %v993, %v1003
        %v1010 = vcombine.high %v1006, %v1007
        %v1012 = vunpack.c.l.s4 1966171168
        %v1013 = vunpack.c.0.s8 %v1012
        %v1014 = vlaneseq
        %v1015 = vshrl.u32 %v1014, 7
        %v1016 = vsub.s32 %v1013, %v1015
        %v1017 = vrot.slane %v1010, %v1016
        %v1019 = vunpack.c.l.s4 1966171168
        %v1020 = vunpack.c.0.s8 %v1019
        %v1021 = vlaneseq
        %v1022 = vshrl.u32 %v1021, 7
        %v1023 = vsub.s32 %v1020, %v1022
        %v1024 = vrot.slane %v1017, %v1023
        %v1026 = vlaneseq
        %vm1027 = vcmp.ge.s32.totalorder %v1026, 0
        %vm1028 = vcmp.lt.s32.totalorder %v1026, 256
        %vm1029 = vmand %vm1027, %vm1028
        %1030 = vst.msk [vmem:[%s331] sm:$0x3] %vm1029, %v1024
        %s1031 = smul.u32 2, %s16
        %p1032 = scmp.lt.s32.totalorder %s1031, 5
        %s1033 = scalar_select %p1032, %s1031, 5
        %s1034 = scalar_lea.vmem %s5, %s1033
        // Predicated region
        $region87: #{mixture_net_forward.1} parent=77 // pred_check
          %p1035 = pneg %p154
        $region88: #{mixture_net_forward.1} parent=77 // pred_check_branch
          %1037 = sbr.rel (%p1035) target = $region90
        $region89: #{mixture_net_forward.1} parent=77 // pred_region
          %s1038 = smul.u32 2, %s16
        $region90: #{mixture_net_forward.1} parent=77 // pred_fallthru
          _
      $region78: #{mixture_net_forward.1} parent=5 // pred_fallthru
        _
      %p1039 = scmp.le.s32.totalorder 2, %s11
      // Predicated region
      $region91: #{mixture_net_forward.1} parent=5 // pred_check
        %p1040 = pneg %p1039
      $region92: #{mixture_net_forward.1} parent=5 // pred_check_branch
        %1042 = sbr.rel (%p1040) target = $region94
      $region93: #{mixture_net_forward.1} parent=5 // pred_region
        %s1043 = ssub.s32 %s11, 2
        // Predicated region
        $region95: #{mixture_net_forward.1} parent=93 // pred_check
          %p1044 = pneg %p160
        $region96: #{mixture_net_forward.1} parent=93 // pred_check_branch
          %1046 = sbr.rel (%p1044) target = $region98
        $region97: #{mixture_net_forward.1} parent=93 // pred_region
          %s1047 = smul.u32 2, %s17
          %p1048 = scmp.lt.s32.totalorder %s1047, 5
          %s1049 = scalar_select %p1048, %s1047, 5
          %s1050 = scalar_lea.vmem %s5, %s1049
        $region98: #{mixture_net_forward.1} parent=93 // pred_fallthru
          _
      $region94: #{mixture_net_forward.1} parent=5 // pred_fallthru
        _
    $region6: #{mixture_net_forward.1} parent=1 // loop_footer
      %s15 = sadd.s32 1, %s11
    $region7: #{mixture_net_forward.1} parent=1 // loop_footer_branch
      %10 = sbr.rel target = $region3
    $region8: #{mixture_net_forward.1} parent=1 // loop_exit
      _

</llo_original>
